<compile_context>
chip_gen: v6e
topology: v6e:2x2x1
jax: 0.10.0
libtpu: 0.0.40
codegen_flags: <defaults>
</compile_context>

<pallas_src>
import functools

import numpy as np
import jax
import jax.numpy as jnp
from jax.experimental import pallas as pl
from jax.experimental.pallas import tpu as pltpu


def _round_up(x, m):
    return (x + m - 1) // m * m


def _ap_rowsum_kernel(f_col_ref, preds_ref, out_ref, *, margin, tile_n):
    """Accumulate sum_j max(margin - (f_i - pred_j), 0)^2 lane-wise.

    out_ref is a (P_pad, 128) partial-sum block that stays resident across the
    inner ("arbitrary") N-tile axis; each 128-wide strip of the tile is a
    full-vreg VPU sub/max/mul/add with no cross-lane work.
    """
    t = pl.program_id(1)

    @pl.when(t == 0)
    def _init():
        out_ref[...] = jnp.zeros_like(out_ref)

    f_col = f_col_ref[...]                                   # (P_pad, 1)
    acc = out_ref[...]                                       # (P_pad, 128)
    # Static unroll over 128-wide strips; sur is never materialized full-width.
    # TODO(synk): for very large P_pad (>~512) add a P grid axis to bound vreg
    # pressure of the (P_pad, 128) register accumulator.
    for s in range(tile_n // 128):
        d = jnp.maximum(margin - (f_col - preds_ref[:, pl.ds(s * 128, 128)]), 0.0)
        acc = acc + d * d
    out_ref[...] = acc


@functools.partial(jax.jit, static_argnames=("margin", "gamma", "tile_n_pref"))
def _ap_loss_device(y_pred, pos_idx, state_idx, p_count, u_all, u_pos,
                    *, margin, gamma, tile_n_pref):
    n_true = y_pred.shape[0]
    p_pad = pos_idx.shape[0]
    pos_len = u_all.shape[0]

    # ---- static tiling decisions (plain Python ints at trace time) ----
    tile_n = max(128, min(_round_up(int(tile_n_pref), 128), _round_up(n_true, 128)))
    n_tiles = -(-n_true // tile_n)
    n_par = 2 if n_tiles >= 2 else 1          # engage both TCs on v7x
    n_tiles = _round_up(n_tiles, n_par)
    n_pad = n_tiles * tile_n
    tiles_per_par = n_tiles // n_par
    inv_n = 1.0 / float(n_true)

    # Pad scores with a very negative value so padded columns give sur == 0;
    # the mean is taken with the true N (inv_n), not the padded N.
    preds = jnp.pad(y_pred, (0, n_pad - n_true),
                    constant_values=-1e9).reshape(1, n_pad)
    f_col = jnp.take(y_pred, pos_idx, axis=0).reshape(p_pad, 1)   # positive scores

    kernel = functools.partial(_ap_rowsum_kernel, margin=float(margin),
                               tile_n=tile_n)

    partial_sums = pl.pallas_call(
        kernel,
        out_shape=jax.ShapeDtypeStruct((n_par, p_pad, 128), jnp.float32),
        grid_spec=pltpu.PrefetchScalarGridSpec(
            num_scalar_prefetch=0,
            grid=(n_par, tiles_per_par),
            in_specs=[
                pl.BlockSpec((p_pad, 1), lambda c, t: (0, 0)),
                pl.BlockSpec((1, tile_n),
                             lambda c, t: (0, c * tiles_per_par + t)),
            ],
            out_specs=pl.BlockSpec((None, p_pad, 128), lambda c, t: (c, 0, 0)),
        ),
        compiler_params=pltpu.CompilerParams(
            dimension_semantics=("parallel", "arbitrary"),
            # Working set per step is tiny (<1 MiB even at tile_n=8192), so a
            # 32 MiB scoped limit is safe on v5e/v6e (128 MiB) and v7x (64 MiB).
            vmem_limit_bytes=32 * 1024 * 1024),
        cost_estimate=pl.CostEstimate(
            flops=4 * p_pad * n_pad,
            transcendentals=0,
            bytes_accessed=4 * (n_pad + p_pad + n_par * p_pad * 128)),
    )(f_col, preds)

    # ---- tiny O(P^2 + P) finalize as plain jnp (per perf review) ----
    cnt = p_count.astype(jnp.int32)
    valid = jnp.arange(p_pad, dtype=jnp.int32) < cnt              # (P_pad,)

    # s_all_i = mean_j sur_ij : combine per-core lane-wise partials once.
    s_all = (jnp.sum(partial_sums, axis=(0, 2)) * inv_n).reshape(p_pad, 1)

    # s_pos_i = mean_j(mask_j * sur_ij): only positive-vs-positive scores.
    spp = jnp.maximum(margin - (f_col - f_col.reshape(1, p_pad)), 0.0)
    spp = spp * spp
    s_pos = jnp.sum(jnp.where(valid[None, :], spp, 0.0),
                    axis=1, keepdims=True) * inv_n                # (P_pad, 1)

    # Moving-average state update on the gathered rows only.
    u_all_g = jnp.take(u_all, state_idx, axis=0, mode="clip")     # (P_pad, 1)
    u_pos_g = jnp.take(u_pos, state_idx, axis=0, mode="clip")
    u_all_new = (1.0 - gamma) * u_all_g + gamma * s_all
    u_pos_new = (1.0 - gamma) * u_pos_g + gamma * s_pos

    # loss = mean_{i,j}(p_ij * sur_ij) collapsed to a per-positive expression.
    inv_u = 1.0 / u_all_new
    term = u_pos_new * s_all * inv_u * inv_u - s_pos * inv_u
    loss = jnp.sum(jnp.where(valid[:, None], term, 0.0)) / cnt.astype(jnp.float32)

    # Scatter back only the valid rows; padded rows map out-of-bounds and drop.
    scat_idx = jnp.where(valid, state_idx, pos_len)
    u_all_out = u_all.at[scat_idx].set(u_all_new, mode="drop")
    u_pos_out = u_pos.at[scat_idx].set(u_pos_new, mode="drop")
    return loss, u_all_out, u_pos_out


def ap_loss_forward(y_pred, y_true, index_p, u_all, u_pos,
                    margin=1.0, gamma=0.99, tile_n=8192):
    """Functional APLoss.forward: returns (loss, new_u_all, new_u_pos)."""
    y_pred = jnp.asarray(y_pred, jnp.float32).reshape(-1)
    y_true_np = np.asarray(y_true).reshape(-1)
    index_np = np.asarray(index_p).reshape(-1)

    # TODO(synk): the data-dependent positive extraction (y_true == 1 /
    # index_p >= 0) has no fixed-shape Pallas equivalent; it runs once on the
    # host and is padded to a static P_pad so the compiled kernel is reused
    # whenever the number of positives stays within the same 8-multiple.
    pos_positions = np.flatnonzero(y_true_np == 1).astype(np.int32)
    state_idx = index_np[index_np >= 0].astype(np.int32)
    p_true = int(pos_positions.size)
    if p_true == 0 or state_idx.size != p_true:
        raise ValueError("need one valid index_p entry per positive sample")

    p_pad = max(_round_up(p_true, 8), 8)
    pos_pad = np.zeros((p_pad,), np.int32)
    idx_pad = np.zeros((p_pad,), np.int32)
    pos_pad[:p_true] = pos_positions
    idx_pad[:p_true] = state_idx

    return _ap_loss_device(
        y_pred,
        jnp.asarray(pos_pad), jnp.asarray(idx_pad),
        jnp.asarray(p_true, dtype=jnp.int32),
        jnp.asarray(u_all, jnp.float32).reshape(-1, 1),
        jnp.asarray(u_pos, jnp.float32).reshape(-1, 1),
        margin=float(margin), gamma=float(gamma), tile_n_pref=int(tile_n))


def ap_loss_reference(y_pred, y_true, index_p, u_all, u_pos,
                      margin=1.0, gamma=0.99):
    """Pure-numpy transcription of APLoss.forward (squared_hinge)."""
    y_pred = np.asarray(y_pred, np.float32).reshape(-1, 1)
    y_true = np.asarray(y_true).reshape(-1, 1)
    index_p = np.asarray(index_p).reshape(-1)
    index_p = index_p[index_p >= 0]
    u_all = np.array(u_all, np.float32, copy=True)
    u_pos = np.array(u_pos, np.float32, copy=True)

    pos_mask = (y_true == 1).reshape(-1)
    f_ps = y_pred[pos_mask]                                   # (P, 1)
    mat = np.tile(y_pred.reshape(-1), (len(f_ps), 1))         # (P, N)
    sur = np.maximum(margin - (f_ps - mat), 0.0) ** 2
    pos_sur = sur * pos_mask
    u_all[index_p] = (1 - gamma) * u_all[index_p] + gamma * sur.mean(1, keepdims=True)
    u_pos[index_p] = (1 - gamma) * u_pos[index_p] + gamma * pos_sur.mean(1, keepdims=True)
    p = (u_pos[index_p] - u_all[index_p] * pos_mask) / u_all[index_p] ** 2
    loss = np.mean(p * sur)
    return loss, u_all, u_pos


if __name__ == "__main__":
    key = jax.random.PRNGKey(0)
    k1, k2 = jax.random.split(key)

    N = 500            # batch of prediction scores (exercises N padding)
    pos_len = 32       # total positives in the dataset (size of u_all / u_pos)
    margin, gamma = 1.0, 0.99

    pos_positions = np.array([0, 83, 166, 249, 332, 415], np.int32)  # P=6 -> pad to 8
    state_slots = np.array([3, 7, 11, 19, 23, 30], np.int32)

    y_true = np.zeros((N,), np.float32)
    y_true[pos_positions] = 1.0
    index_p = np.full((N,), -1, np.int32)
    index_p[pos_positions] = state_slots

    # module __init__ state: u_all = u_pos = zeros((pos_len, 1))
    u_all = jnp.zeros((pos_len, 1), jnp.float32)
    u_pos = jnp.zeros((pos_len, 1), jnp.float32)
    u_all_ref = np.zeros((pos_len, 1), np.float32)
    u_pos_ref = np.zeros((pos_len, 1), np.float32)

    # two sequential steps: the second exercises the nonzero-state path
    for step_key in (k1, k2):
        y_pred = jax.random.normal(step_key, (N,), dtype=jnp.float32)

        loss, u_all, u_pos = ap_loss_forward(
            y_pred, y_true, index_p, u_all, u_pos, margin=margin, gamma=gamma)
        jax.block_until_ready((loss, u_all, u_pos))

        loss_ref, u_all_ref, u_pos_ref = ap_loss_reference(
            np.asarray(y_pred), y_true, index_p, u_all_ref, u_pos_ref,
            margin=margin, gamma=gamma)

        np.testing.assert_allclose(np.asarray(loss), loss_ref, rtol=1e-4, atol=1e-6)
        np.testing.assert_allclose(np.asarray(u_all), u_all_ref, rtol=1e-4, atol=1e-6)
        np.testing.assert_allclose(np.asarray(u_pos), u_pos_ref, rtol=1e-4, atol=1e-6)

    print("KERNEL_OK")
</pallas_src>

<mosaic_0001>
module attributes {stable_mosaic.version = 11 : i64} {
  func.func @_ap_rowsum_kernel(%arg0: i32, %arg1: i32, %arg2: memref<8x1xf32, #tpu.memory_space<vmem>>, %arg3: memref<1x512xf32, #tpu.memory_space<vmem>>, %arg4: memref<1x8x128xf32, #tpu.memory_space<vmem>>) attributes {dimension_semantics = [#tpu.dimension_semantics<parallel>, #tpu.dimension_semantics<arbitrary>], iteration_bounds = array<i64: 1, 1>, scalar_prefetch = 0 : i64, scratch_operands = 0 : i64, tpu.core_type = #tpu.core_type<tc>, window_params = [{pipeline_mode = #tpu.pipeline_mode<synchronous>, transform_indices = @transform_0, window_bounds = array<i64: 8, 1>}, {transform_indices = @transform_1, window_bounds = array<i64: 1, 512>}, {transform_indices = @transform_2, window_bounds = array<i64: 1, 8, 128>}]} {
    %c0_i32 = arith.constant 0 : i32
    %0 = arith.cmpi eq, %arg1, %c0_i32 : i32
    %1 = arith.extui %0 : i1 to i32
    %c0_i32_0 = arith.constant 0 : i32
    %2 = arith.cmpi ne, %1, %c0_i32_0 : i32
    scf.if %2 {
      %cst_20 = arith.constant 0.000000e+00 : f32
      %49 = vector.broadcast %cst_20 : f32 to vector<8x128xf32>
      %c0_21 = arith.constant 0 : index
      %c0_22 = arith.constant 0 : index
      %c0_23 = arith.constant 0 : index
      %50 = vector.load %arg4[%c0_21, %c0_22, %c0_23] : memref<1x8x128xf32, #tpu.memory_space<vmem>>, vector<1x8x128xf32>
      %51 = vector.shape_cast %50 : vector<1x8x128xf32> to vector<8x128xf32>
      %52 = vector.shape_cast %49 : vector<8x128xf32> to vector<1x8x128xf32>
      tpu.vector_store %arg4[%c0_21, %c0_22, %c0_23], %52 {strides = array<i32>} : memref<1x8x128xf32, #tpu.memory_space<vmem>>, vector<1x8x128xf32>,
    } else {
    }
    %c0 = arith.constant 0 : index
    %c0_1 = arith.constant 0 : index
    %3 = vector.load %arg2[%c0, %c0_1] : memref<8x1xf32, #tpu.memory_space<vmem>>, vector<8x1xf32>
    %c0_2 = arith.constant 0 : index
    %c0_3 = arith.constant 0 : index
    %c0_4 = arith.constant 0 : index
    %4 = vector.load %arg4[%c0_2, %c0_3, %c0_4] : memref<1x8x128xf32, #tpu.memory_space<vmem>>, vector<1x8x128xf32>
    %5 = vector.shape_cast %4 : vector<1x8x128xf32> to vector<8x128xf32>
    %c0_5 = arith.constant 0 : index
    %c0_6 = arith.constant 0 : index
    %6 = vector.load %arg3[%c0_5, %c0_6] : memref<1x512xf32, #tpu.memory_space<vmem>>, vector<1x128xf32>
    %7 = vector.broadcast %3 : vector<8x1xf32> to vector<8x128xf32>
    %8 = vector.broadcast %6 : vector<1x128xf32> to vector<8x128xf32>
    %9 = arith.subf %7, %8 : vector<8x128xf32>
    %cst = arith.constant 1.000000e+00 : f32
    %10 = vector.broadcast %cst : f32 to vector<8x128xf32>
    %11 = arith.subf %10, %9 : vector<8x128xf32>
    %cst_7 = arith.constant 0.000000e+00 : f32
    %12 = vector.broadcast %cst_7 : f32 to vector<8x128xf32>
    %13 = arith.maximumf %11, %12 : vector<8x128xf32>
    %14 = arith.mulf %13, %13 : vector<8x128xf32>
    %15 = arith.addf %5, %14 : vector<8x128xf32>
    %c0_8 = arith.constant 0 : index
    %c128 = arith.constant 128 : index
    %16 = vector.load %arg3[%c0_8, %c128] : memref<1x512xf32, #tpu.memory_space<vmem>>, vector<1x128xf32>
    %17 = vector.broadcast %3 : vector<8x1xf32> to vector<8x128xf32>
    %18 = vector.broadcast %16 : vector<1x128xf32> to vector<8x128xf32>
    %19 = arith.subf %17, %18 : vector<8x128xf32>
    %cst_9 = arith.constant 1.000000e+00 : f32
    %20 = vector.broadcast %cst_9 : f32 to vector<8x128xf32>
    %21 = arith.subf %20, %19 : vector<8x128xf32>
    %cst_10 = arith.constant 0.000000e+00 : f32
    %22 = vector.broadcast %cst_10 : f32 to vector<8x128xf32>
    %23 = arith.maximumf %21, %22 : vector<8x128xf32>
    %24 = arith.mulf %23, %23 : vector<8x128xf32>
    %25 = arith.addf %15, %24 : vector<8x128xf32>
    %c0_11 = arith.constant 0 : index
    %c256 = arith.constant 256 : index
    %26 = vector.load %arg3[%c0_11, %c256] : memref<1x512xf32, #tpu.memory_space<vmem>>, vector<1x128xf32>
    %27 = vector.broadcast %3 : vector<8x1xf32> to vector<8x128xf32>
    %28 = vector.broadcast %26 : vector<1x128xf32> to vector<8x128xf32>
    %29 = arith.subf %27, %28 : vector<8x128xf32>
    %cst_12 = arith.constant 1.000000e+00 : f32
    %30 = vector.broadcast %cst_12 : f32 to vector<8x128xf32>
    %31 = arith.subf %30, %29 : vector<8x128xf32>
    %cst_13 = arith.constant 0.000000e+00 : f32
    %32 = vector.broadcast %cst_13 : f32 to vector<8x128xf32>
    %33 = arith.maximumf %31, %32 : vector<8x128xf32>
    %34 = arith.mulf %33, %33 : vector<8x128xf32>
    %35 = arith.addf %25, %34 : vector<8x128xf32>
    %c0_14 = arith.constant 0 : index
    %c384 = arith.constant 384 : index
    %36 = vector.load %arg3[%c0_14, %c384] : memref<1x512xf32, #tpu.memory_space<vmem>>, vector<1x128xf32>
    %37 = vector.broadcast %3 : vector<8x1xf32> to vector<8x128xf32>
    %38 = vector.broadcast %36 : vector<1x128xf32> to vector<8x128xf32>
    %39 = arith.subf %37, %38 : vector<8x128xf32>
    %cst_15 = arith.constant 1.000000e+00 : f32
    %40 = vector.broadcast %cst_15 : f32 to vector<8x128xf32>
    %41 = arith.subf %40, %39 : vector<8x128xf32>
    %cst_16 = arith.constant 0.000000e+00 : f32
    %42 = vector.broadcast %cst_16 : f32 to vector<8x128xf32>
    %43 = arith.maximumf %41, %42 : vector<8x128xf32>
    %44 = arith.mulf %43, %43 : vector<8x128xf32>
    %45 = arith.addf %35, %44 : vector<8x128xf32>
    %c0_17 = arith.constant 0 : index
    %c0_18 = arith.constant 0 : index
    %c0_19 = arith.constant 0 : index
    %46 = vector.load %arg4[%c0_17, %c0_18, %c0_19] : memref<1x8x128xf32, #tpu.memory_space<vmem>>, vector<1x8x128xf32>
    %47 = vector.shape_cast %46 : vector<1x8x128xf32> to vector<8x128xf32>
    %48 = vector.shape_cast %45 : vector<8x128xf32> to vector<1x8x128xf32>
    tpu.vector_store %arg4[%c0_17, %c0_18, %c0_19], %48 {strides = array<i32>} : memref<1x8x128xf32, #tpu.memory_space<vmem>>, vector<1x8x128xf32>,
    return
  }
  func.func @transform_0(%arg0: i32, %arg1: i32) -> (i32, i32) {
    %c0_i32 = arith.constant 0 : i32
    %c0_i32_0 = arith.constant 0 : i32
    %c0_i32_1 = arith.constant 0 : i32
    return %c0_i32, %c0_i32_0 : i32, i32
  }
  func.func @transform_1(%arg0: i32, %arg1: i32) -> (i32, i32) {
    %c1_i32 = arith.constant 1 : i32
    %0 = arith.muli %arg0, %c1_i32 : i32
    %1 = arith.addi %0, %arg1 : i32
    %c0_i32 = arith.constant 0 : i32
    %c0_i32_0 = arith.constant 0 : i32
    return %c0_i32, %1 : i32, i32
  }
  func.func @transform_2(%arg0: i32, %arg1: i32) -> (i32, i32, i32) {
    %c0_i32 = arith.constant 0 : i32
    %c0_i32_0 = arith.constant 0 : i32
    %c0_i32_1 = arith.constant 0 : i32
    return %arg0, %c0_i32, %c0_i32_0 : i32, i32, i32
  }
}

</mosaic_0001>

<llo_original>
// kernel: _ap_loss_device.1
$region0: #{_ap_loss_device.1}
  #allocation0 [shape = 'u32[]', space=smem, size = 0x4, offset = 0x4, fixed_abs, tag = 'smem constant byte address 0x4 - core index']
  #allocation1 [shape = 'u32[144,128]{1,0:T(1,128)}', space=vmem, size = 0x12000, scoped, tag = 'internal scratch']
  %s0 = inlined_call_operand.vmem [shape: f32[8,1], index: 0, kind: input, shape index: {}]
  %s1 = inlined_call_operand.vmem [shape: f32[1,512], index: 1, kind: input, shape index: {}]
  %s2 = inlined_call_operand.vmem [shape: f32[1,8,128], index: 2, kind: output, shape index: {}]
  %s3 = sld [smem:[#allocation0]]
  $region22: #{_ap_loss_device.1} parent=0
    _
  %s5 = ssub.s32 1, %s3
  %s6 = scalar_select 0, %s5, %s3
  // Predicated region
  $region2: #{_ap_loss_device.1} parent=0 // pred_check
    _
  $region3: #{_ap_loss_device.1} parent=0 // pred_check_branch
    %8 = sbr.rel (0) target = $region5
  $region4: #{_ap_loss_device.1} parent=0 // pred_region
    _
  $region5: #{_ap_loss_device.1} parent=0 // pred_fallthru
    _
  // Predicated region
  $region6: #{_ap_loss_device.1} parent=0 // pred_check
    _
  $region7: #{_ap_loss_device.1} parent=0 // pred_check_branch
    %10 = sbr.rel (0) target = $region9
  $region8: #{_ap_loss_device.1} parent=0 // pred_region
    %s11 = sadd.s32 0, 0
    %s12 = smul.u32 4, %s11
    %p13 = scmp.lt.s32.totalorder %s12, 3
    %s14 = scalar_select %p13, %s12, 3
    %s15 = scalar_lea.vmem %s1, %s14
    %s16 = sadd.s32 0, 0
    %s17 = smul.u32 4, %s16
  $region9: #{_ap_loss_device.1} parent=0 // pred_fallthru
    _
  %s18 = sadd.s32 0, 0
  %s19 = smul.u32 4, %s18
  %p20 = scmp.lt.s32.totalorder %s19, 3
  %s21 = scalar_select %p20, %s19, 3
  %s22 = scalar_lea.vmem %s1, %s21
  %s23 = sadd.s32 0, 0
  %s24 = smul.u32 4, %s23
  %p25 = scmp.lt.s32.totalorder %s24, 3
  %s26 = scalar_select %p25, %s24, 3
  %s27 = scalar_lea.vmem %s1, %s26
  %s28 = sadd.s32 0, 0
  %s29 = smul.u32 4, %s28
  %p30 = scmp.eq.s32.totalorder 0, 0
  // Predicated region
  $region10: #{_ap_loss_device.1} parent=0 // pred_check
    %p31 = pneg %p30
  $region11: #{_ap_loss_device.1} parent=0 // pred_check_branch
    %33 = sbr.rel (%p31) target = $region13
  $region12: #{_ap_loss_device.1} parent=0 // pred_region
    %34 = vst [vmem:[%s2] sm:$0xff] 0.0
  $region13: #{_ap_loss_device.1} parent=0 // pred_fallthru
    _
  %v35 = vld [vmem:[%s0] sm:$0xff]
  %v36 = vld [vmem:[%s2] sm:$0xff]
  %v37 = vld [vmem:[%s27] sm:$0x1]
  %39 = vset.pattern.permute.xlu0 0
  %40 = vperm.xlu0 %39, %v35
  %v41 = vpop.permute.xlu0 %40
  %v44 = vlaneseq
  %v45 = vshrl.u32 %v44, 7
  %v46 = vsub.s32 0, %v45
  %v47 = vrot.slane %v37, %v46
  %v49 = vsub.f32 %v41, %v47
  %v50 = vsub.f32 1.0, %v49
  %v51 = vmax.f32 %v50, 0.0
  %v52 = vmul.f32 %v51, %v51
  %v53 = vadd.f32 %v36, %v52
  %v54 = vld [vmem:[%s27 + $0x1] sm:$0x1]
  %v56 = vlaneseq
  %v57 = vshrl.u32 %v56, 7
  %v58 = vsub.s32 0, %v57
  %v59 = vrot.slane %v54, %v58
  %v61 = vsub.f32 %v41, %v59
  %v62 = vsub.f32 1.0, %v61
  %v63 = vmax.f32 %v62, 0.0
  %v64 = vmul.f32 %v63, %v63
  %v65 = vadd.f32 %v53, %v64
  %v66 = vld [vmem:[%s27 + $0x2] sm:$0x1]
  %v68 = vlaneseq
  %v69 = vshrl.u32 %v68, 7
  %v70 = vsub.s32 0, %v69
  %v71 = vrot.slane %v66, %v70
  %v73 = vsub.f32 %v41, %v71
  %v74 = vsub.f32 1.0, %v73
  %v75 = vmax.f32 %v74, 0.0
  %v76 = vmul.f32 %v75, %v75
  %v77 = vadd.f32 %v65, %v76
  %v78 = vld [vmem:[%s27 + $0x3] sm:$0x1]
  %v80 = vlaneseq
  %v81 = vshrl.u32 %v80, 7
  %v82 = vsub.s32 0, %v81
  %v83 = vrot.slane %v78, %v82
  %v85 = vsub.f32 %v41, %v83
  %v86 = vsub.f32 1.0, %v85
  %v87 = vmax.f32 %v86, 0.0
  %v88 = vmul.f32 %v87, %v87
  %v89 = vadd.f32 %v77, %v88
  %90 = vst [vmem:[%s2] sm:$0xff] %v89
  // Predicated region
  $region14: #{_ap_loss_device.1} parent=0 // pred_check
    _
  $region15: #{_ap_loss_device.1} parent=0 // pred_check_branch
    %92 = sbr.rel (0) target = $region17
  $region16: #{_ap_loss_device.1} parent=0 // pred_region
    _
  $region17: #{_ap_loss_device.1} parent=0 // pred_fallthru
    _
  // Predicated region
  $region18: #{_ap_loss_device.1} parent=0 // pred_check
    _
  $region19: #{_ap_loss_device.1} parent=0 // pred_check_branch
    %94 = sbr.rel (0) target = $region21
  $region20: #{_ap_loss_device.1} parent=0 // pred_region
    _
  $region21: #{_ap_loss_device.1} parent=0 // pred_fallthru
    _

</llo_original>
